<compile_context>
chip_gen: v7x
topology: tpu7x:2x2x1
jax: 0.10.0
libtpu: 0.0.40
codegen_flags: <defaults>
</compile_context>

<pallas_src>
import functools

import jax
import jax.numpy as jnp
from jax.experimental import pallas as pl
from jax.experimental.pallas import tpu as pltpu

# Safe across generations: well under v5e/v6e 128 MiB physical, leaves 16 MiB
# headroom on v7x's 64 MiB physical VMEM.
_VMEM_LIMIT_BYTES = 48 * 1024 * 1024
# Keep total resident footprint to ~half the scoped limit.
_VMEM_BUDGET_BYTES = _VMEM_LIMIT_BYTES // 2


def _round_up(n, m):
    return ((n + m - 1) // m) * m


def _mlp_kernel(x_ref, w1_ref, b1_ref, w2_ref, b2_ref, out_ref):
    # Cast x to the weight dtype inside the kernel (no-op for f32; for a bf16
    # weight path the cast is VPU work hidden under the x DMA).
    x = x_ref[...].astype(w1_ref.dtype)
    # fc1 on the MXU with f32 accumulation.
    h = jnp.dot(x, w1_ref[...], preferred_element_type=jnp.float32)
    # Bias + ReLU epilogue kept in f32 (v5e's VPU has no bf16 ALU).
    h = jnp.maximum(h + b1_ref[...], 0.0)
    # fc2; cast h to the weight dtype so a bf16 path stays on the bf16 MXU.
    y = jnp.dot(h.astype(w2_ref.dtype), w2_ref[...],
                preferred_element_type=jnp.float32)
    out_ref[...] = (y + b2_ref[...]).astype(out_ref.dtype)


def prepare_params(w1, b1, w2, b2, *, compute_dtype=None, lane_align=128):
    """One-time (model-load) parameter prep: pad hidden dim, reshape biases,
    optionally cast weights.  Do NOT call this per forward pass.

    Args:
      w1: [input_size, hidden]   (== torch fc1.weight.T)
      b1: [hidden]
      w2: [hidden, output]       (== torch fc2.weight.T)
      b2: [output]
      compute_dtype: optional dtype (e.g. jnp.bfloat16) for the weights;
        MXU accumulation and the bias/ReLU epilogue stay f32.
      lane_align: hidden-dim alignment; 128 matches the vreg lane width.
        (Use 256 on v6e/v7x if a large, MXU-bound hidden size is in play.)
    Returns:
      (w1p, b1p, w2p, b2p) ready to pass to simple_behavior_net.
    """
    hidden = w1.shape[1]
    h_pad = _round_up(hidden, lane_align)

    # Zero-padded hidden columns stay exactly zero through bias + ReLU, so the
    # math is unchanged.  The output dim is intentionally NOT padded: the
    # output block's last dim equals the full array dim (legal) and keeping it
    # unpadded avoids writing padded garbage to HBM + a post-kernel slice.
    w1p = jnp.pad(w1, ((0, 0), (0, h_pad - hidden)))
    b1p = jnp.pad(b1, (0, h_pad - hidden)).reshape(1, h_pad).astype(jnp.float32)
    w2p = jnp.pad(w2, ((0, h_pad - hidden), (0, 0)))
    b2p = jnp.asarray(b2).reshape(1, -1).astype(jnp.float32)

    if compute_dtype is not None:
        w1p = w1p.astype(compute_dtype)
        w2p = w2p.astype(compute_dtype)

    return w1p, b1p, w2p, b2p


@functools.partial(jax.jit, static_argnames=("block_b", "small_batch_threshold"))
def simple_behavior_net(x, w1p, b1p, w2p, b2p, *, block_b=2048,
                        small_batch_threshold=256):
    """Forward pass of SimpleBehaviorNet (fc1 -> ReLU -> fc2).

    Args:
      x: [B, input_size] float32 (cast to the weight dtype inside the kernel).
      w1p, b1p, w2p, b2p: pre-prepared params from prepare_params().
      block_b: batch tile for the gridded path.
      small_batch_threshold: batches at or below this size use the single
        whole-array VMEM call (no grid / pipeline machinery).
    Returns:
      [B, output_size] float32
    """
    B, in_size = x.shape
    h_pad = w1p.shape[1]
    out_size = w2p.shape[1]

    x_itemsize = jnp.dtype(x.dtype).itemsize
    w_itemsize = jnp.dtype(w1p.dtype).itemsize

    cost = pl.CostEstimate(
        flops=2 * B * (in_size * h_pad + h_pad * out_size),
        transcendentals=0,
        bytes_accessed=(x_itemsize * B * in_size
                        + w_itemsize * (in_size * h_pad + h_pad * out_size)
                        + 4 * (h_pad + out_size + B * out_size)),
    )

    if B <= small_batch_threshold:
        # Tiny-batch path: no grid, no pipeline machinery — everything is a
        # single whole-array VMEM-resident block.
        return pl.pallas_call(
            _mlp_kernel,
            out_shape=jax.ShapeDtypeStruct((B, out_size), jnp.float32),
            in_specs=[pl.BlockSpec(memory_space=pltpu.MemorySpace.VMEM)] * 5,
            out_specs=pl.BlockSpec(memory_space=pltpu.MemorySpace.VMEM),
            compiler_params=pltpu.CompilerParams(
                vmem_limit_bytes=_VMEM_LIMIT_BYTES),
            cost_estimate=cost,
        )(x, w1p, b1p, w2p, b2p)

    # Batch-tiled path: grid over batch only.  Weights/biases use constant
    # index_maps so they stay VMEM-resident across tiles (no re-DMA);
    # "parallel" lets v7x shard the batch axis across both TensorCores.
    # Static VMEM-budget check: halve block_b until resident weights plus
    # double-buffered x/out tiles plus the per-tile h slab fit the budget.
    bb = min(block_b, B)
    resident = (w_itemsize * (in_size * h_pad + h_pad * out_size)
                + 4 * (h_pad + out_size))
    def tile_bytes(b):
        return 2 * b * (in_size * x_itemsize + out_size * 4) + b * h_pad * 4
    while bb > 8 and resident + tile_bytes(bb) > _VMEM_BUDGET_BYTES:
        bb //= 2
    bb = max(8, (bb // 8) * 8)  # keep second-to-last block dim 8-aligned

    grid = (pl.cdiv(B, bb),)
    # No batch padding of x and no output-dim padding: Pallas masks the edge
    # block's stores, and out-of-range rows never reach HBM.
    # TODO(synk): if profiling shows exposed x DMA, add
    # pipeline_mode=pl.Buffered(3) to the x BlockSpec.
    return pl.pallas_call(
        _mlp_kernel,
        out_shape=jax.ShapeDtypeStruct((B, out_size), jnp.float32),
        grid_spec=pltpu.PrefetchScalarGridSpec(
            num_scalar_prefetch=0,
            grid=grid,
            in_specs=[
                pl.BlockSpec((bb, in_size), lambda i: (i, 0)),
                pl.BlockSpec((in_size, h_pad), lambda i: (0, 0)),
                pl.BlockSpec((1, h_pad), lambda i: (0, 0)),
                pl.BlockSpec((h_pad, out_size), lambda i: (0, 0)),
                pl.BlockSpec((1, out_size), lambda i: (0, 0)),
            ],
            out_specs=pl.BlockSpec((bb, out_size), lambda i: (i, 0)),
        ),
        compiler_params=pltpu.CompilerParams(
            dimension_semantics=("parallel",),
            vmem_limit_bytes=_VMEM_LIMIT_BYTES),
        cost_estimate=cost,
    )(x, w1p, b1p, w2p, b2p)


def _init_params(key, input_size, hidden_size, output_size):
    # Deterministic init mimicking torch.nn.Linear's U(-1/sqrt(fan_in), ...).
    k1, k2, k3, k4 = jax.random.split(key, 4)
    lim1 = 1.0 / jnp.sqrt(jnp.float32(input_size))
    lim2 = 1.0 / jnp.sqrt(jnp.float32(hidden_size))
    w1 = jax.random.uniform(k1, (input_size, hidden_size), jnp.float32, -lim1, lim1)
    b1 = jax.random.uniform(k2, (hidden_size,), jnp.float32, -lim1, lim1)
    w2 = jax.random.uniform(k3, (hidden_size, output_size), jnp.float32, -lim2, lim2)
    b2 = jax.random.uniform(k4, (output_size,), jnp.float32, -lim2, lim2)
    return w1, b1, w2, b2


def _ref(x, w1, b1, w2, b2):
    return jnp.maximum(x @ w1 + b1, 0.0) @ w2 + b2


if __name__ == "__main__":
    INPUT, HIDDEN, OUTPUT = 16, 32, 8
    key = jax.random.PRNGKey(0)
    kx, kp, kx2 = jax.random.split(key, 3)
    w1, b1, w2, b2 = _init_params(kp, INPUT, HIDDEN, OUTPUT)

    # One-time parameter preparation (pad hidden dim, reshape biases).
    params_f32 = prepare_params(w1, b1, w2, b2)
    params_bf16 = prepare_params(w1, b1, w2, b2, compute_dtype=jnp.bfloat16)

    # 1) Tiny-batch (no-grid) path, f32 — module-consistent shapes.
    B = 8
    x = jax.random.normal(kx, (B, INPUT), jnp.float32)
    out = simple_behavior_net(x, *params_f32)
    jax.block_until_ready(out)
    assert out.shape == (B, OUTPUT)
    assert jnp.allclose(out, _ref(x, w1, b1, w2, b2), atol=1e-5, rtol=1e-5)

    # 2) Batch-tiled ("parallel" grid) path, f32, non-multiple batch
    #    (exercises masked edge-block stores: 600 = 256 + 256 + 88).
    B2 = 600
    x2 = jax.random.normal(kx2, (B2, INPUT), jnp.float32)
    out2 = simple_behavior_net(x2, *params_f32, block_b=256)
    jax.block_until_ready(out2)
    assert out2.shape == (B2, OUTPUT)
    assert jnp.allclose(out2, _ref(x2, w1, b1, w2, b2), atol=1e-5, rtol=1e-5)

    # 3) bf16 weight path (f32 x, in-kernel cast, f32 accumulation) — looser
    #    tolerance.
    out3 = simple_behavior_net(x2, *params_bf16, block_b=256)
    jax.block_until_ready(out3)
    assert out3.shape == (B2, OUTPUT)
    assert jnp.allclose(out3, _ref(x2, w1, b1, w2, b2), atol=5e-2, rtol=5e-2)

    print("KERNEL_OK")
</pallas_src>

<mosaic_0001>
module attributes {stable_mosaic.version = 11 : i64} {
  func.func @_mlp_kernel(%arg0: memref<8x16xf32, #tpu.memory_space<vmem>>, %arg1: memref<16x128xf32, #tpu.memory_space<vmem>>, %arg2: memref<1x128xf32, #tpu.memory_space<vmem>>, %arg3: memref<128x8xf32, #tpu.memory_space<vmem>>, %arg4: memref<1x8xf32, #tpu.memory_space<vmem>>, %arg5: memref<8x8xf32, #tpu.memory_space<vmem>>) attributes {dimension_semantics = [], scalar_prefetch = 0 : i64, scratch_operands = 0 : i64, tpu.core_type = #tpu.core_type<tc>} {
    %c0 = arith.constant 0 : index
    %c0_0 = arith.constant 0 : index
    %0 = vector.load %arg0[%c0, %c0_0] : memref<8x16xf32, #tpu.memory_space<vmem>>, vector<8x16xf32>
    %c0_1 = arith.constant 0 : index
    %c0_2 = arith.constant 0 : index
    %1 = vector.load %arg1[%c0_1, %c0_2] : memref<16x128xf32, #tpu.memory_space<vmem>>, vector<16x128xf32>
    %cst = arith.constant dense<0.000000e+00> : vector<8x128xf32>
    %2 = tpu.matmul %0, %1, %cst {dimension_numbers = #tpu.dot_dimension_numbers<[1], [0], [0], [1], [0, 0, 1, 1], [], []>} : vector<8x16xf32>, vector<16x128xf32>, vector<8x128xf32> -> vector<8x128xf32>
    %c0_3 = arith.constant 0 : index
    %c0_4 = arith.constant 0 : index
    %3 = vector.load %arg2[%c0_3, %c0_4] : memref<1x128xf32, #tpu.memory_space<vmem>>, vector<1x128xf32>
    %4 = vector.broadcast %3 : vector<1x128xf32> to vector<8x128xf32>
    %5 = arith.addf %2, %4 : vector<8x128xf32>
    %cst_5 = arith.constant 0.000000e+00 : f32
    %6 = vector.broadcast %cst_5 : f32 to vector<8x128xf32>
    %7 = arith.maximumf %5, %6 : vector<8x128xf32>
    %c0_6 = arith.constant 0 : index
    %c0_7 = arith.constant 0 : index
    %8 = vector.load %arg3[%c0_6, %c0_7] : memref<128x8xf32, #tpu.memory_space<vmem>>, vector<128x8xf32>
    %cst_8 = arith.constant dense<0.000000e+00> : vector<8x8xf32>
    %9 = tpu.matmul %7, %8, %cst_8 {dimension_numbers = #tpu.dot_dimension_numbers<[1], [0], [0], [1], [0, 0, 1, 1], [], []>} : vector<8x128xf32>, vector<128x8xf32>, vector<8x8xf32> -> vector<8x8xf32>
    %c0_9 = arith.constant 0 : index
    %c0_10 = arith.constant 0 : index
    %10 = vector.load %arg4[%c0_9, %c0_10] : memref<1x8xf32, #tpu.memory_space<vmem>>, vector<1x8xf32>
    %11 = vector.broadcast %10 : vector<1x8xf32> to vector<8x8xf32>
    %12 = arith.addf %9, %11 : vector<8x8xf32>
    %c0_11 = arith.constant 0 : index
    %c0_12 = arith.constant 0 : index
    %13 = vector.load %arg5[%c0_11, %c0_12] : memref<8x8xf32, #tpu.memory_space<vmem>>, vector<8x8xf32>
    tpu.vector_store %arg5[%c0_11, %c0_12], %12 {strides = array<i32>} : memref<8x8xf32, #tpu.memory_space<vmem>>, vector<8x8xf32>,
    return
  }
}

</mosaic_0001>

<llo_original>
// kernel: simple_behavior_net.1
$region0: #{simple_behavior_net.1}
  #allocation0 [shape = 'u32[]', space=smem, size = 0x4, offset = 0x4, fixed_abs, tag = 'smem constant byte address 0x4 - core index']
  #allocation1 [shape = 'u32[144,128]{1,0:T(1,128)}', space=vmem, size = 0x12000, scoped, tag = 'internal scratch']
  %s0 = inlined_call_operand.vmem [shape: f32[8,16], index: 0, kind: input, shape index: {}]
  %s1 = inlined_call_operand.vmem [shape: f32[16,128], index: 1, kind: input, shape index: {}]
  %s2 = inlined_call_operand.vmem [shape: f32[1,128], index: 2, kind: input, shape index: {}]
  %s3 = inlined_call_operand.vmem [shape: f32[128,8], index: 3, kind: input, shape index: {}]
  %s4 = inlined_call_operand.vmem [shape: f32[1,8], index: 4, kind: input, shape index: {}]
  %s5 = inlined_call_operand.hbm [shape: f32[8,8], index: 5, kind: output, shape index: {}]
  %s6 = sld [smem:[#allocation0]]
  $region30: #{simple_behavior_net.1} parent=0
    _
  %s8 = ssub.s32 1, %s6
  %s9 = scalar_select 0, %s8, %s6
  $region1: #{simple_behavior_net.1} parent=0
    #allocation2 [shape = 'u8[4096]{0}', space=vmem, size = 0x1000, scoped, tag = 'output window, operand 0, single buffered']
    #allocation3 [shape = 's32[1]{0}', space=sflag, size = 0x4, scoped, tag = 'scoped memory for simple_behavior_net.1']
    %10 = vsyncpa [#allocation3], 0
    // Predicated region
    $region2: #{simple_behavior_net.1} parent=1 // pred_check
      _
    $region3: #{simple_behavior_net.1} parent=1 // pred_check_branch
      %12 = sbr.rel (0) target = $region5
    $region4: #{simple_behavior_net.1} parent=1 // pred_region
      _
    $region5: #{simple_behavior_net.1} parent=1 // pred_fallthru
      _
    // Predicated region
    $region6: #{simple_behavior_net.1} parent=1 // pred_check
      _
    $region7: #{simple_behavior_net.1} parent=1 // pred_check_branch
      %14 = sbr.rel (0) target = $region9
    $region8: #{simple_behavior_net.1} parent=1 // pred_region
      _
    $region9: #{simple_behavior_net.1} parent=1 // pred_fallthru
      _
    // Predicated region
    $region10: #{simple_behavior_net.1} parent=1 // pred_check
      _
    $region11: #{simple_behavior_net.1} parent=1 // pred_check_branch
      %16 = sbr.rel (0) target = $region13
    $region12: #{simple_behavior_net.1} parent=1 // pred_region
      _
    $region13: #{simple_behavior_net.1} parent=1 // pred_fallthru
      _
    // Predicated region
    $region14: #{simple_behavior_net.1} parent=1 // pred_check
      _
    $region15: #{simple_behavior_net.1} parent=1 // pred_check_branch
      %18 = sbr.rel (0) target = $region17
    $region16: #{simple_behavior_net.1} parent=1 // pred_region
      _
    $region17: #{simple_behavior_net.1} parent=1 // pred_fallthru
      _
    // Predicated region
    $region18: #{simple_behavior_net.1} parent=1 // pred_check
      _
    $region19: #{simple_behavior_net.1} parent=1 // pred_check_branch
      %20 = sbr.rel (0) target = $region21
    $region20: #{simple_behavior_net.1} parent=1 // pred_region
      _
    $region21: #{simple_behavior_net.1} parent=1 // pred_fallthru
      _
    %v21 = vld [vmem:[%s0] sm:$0xff]
    %v22 = vld [vmem:[%s1] sm:$0xff]
    %v23 = vld [vmem:[%s1 + $0x8] sm:$0xff]
    %v24 = vld [vmem:[%s2] sm:$0x1]
    %v26 = vlaneseq
    %v27 = vshrl.u32 %v26, 7
    %v28 = vsub.s32 0, %v27
    %v29 = vrot.slane %v24, %v28
    %vm31 = vcmask 130048
    %v33 = vsel %vm31, %v21, 0
    %35 = vmatprep.subr.mxu0 0.0
    %36 = vmatpush1.msra.mxu0 %v22
    %37 = vmatprep.subr.mxu0 0.0
    %38 = vmatpush1.msra.mxu0 %v23
    %39 = vmatprep.subr.mxu0 0.0
    %40 = vmatpush1.msra.mxu0 0.0
    %41 = vmatprep.subr.mxu0 0.0
    %42 = vmatpush1.msra.mxu0 0.0
    %43 = vmatprep.subr.mxu0 0.0
    %44 = vmatpush1.msra.mxu0 0.0
    %45 = vmatprep.subr.mxu0 0.0
    %46 = vmatpush1.msra.mxu0 0.0
    %47 = vmatprep.subr.mxu0 0.0
    %48 = vmatpush1.msra.mxu0 0.0
    %49 = vmatprep.subr.mxu0 0.0
    %50 = vmatpush1.msra.mxu0 0.0
    %51 = vmatprep.subr.mxu0 0.0
    %52 = vmatpush1.msra.mxu0 0.0
    %53 = vmatprep.subr.mxu0 0.0
    %54 = vmatpush1.msra.mxu0 0.0
    %55 = vmatprep.subr.mxu0 0.0
    %56 = vmatpush1.msra.mxu0 0.0
    %57 = vmatprep.subr.mxu0 0.0
    %58 = vmatpush1.msra.mxu0 0.0
    %59 = vmatprep.subr.mxu0 0.0
    %60 = vmatpush1.msra.mxu0 0.0
    %61 = vmatprep.subr.mxu0 0.0
    %62 = vmatpush1.msra.mxu0 0.0
    %63 = vmatprep.subr.mxu0 0.0
    %64 = vmatpush1.msra.mxu0 0.0
    %65 = vmatprep.subr.mxu0 0.0
    %66 = vmatpush1.msra.mxu0 0.0
    %67 = vmatprep.subr.mxu0 0.0
    %68 = vmatpush1.msra.mxu0 0.0
    %69 = vmatprep.subr.mxu0 0.0
    %70 = vmatpush1.msra.mxu0 0.0
    %71 = vmatprep.subr.mxu0 0.0
    %72 = vmatpush1.msra.mxu0 0.0
    %73 = vmatprep.subr.mxu0 0.0
    %74 = vmatpush1.msra.mxu0 0.0
    %75 = vmatprep.subr.mxu0 0.0
    %76 = vmatpush1.msra.mxu0 0.0
    %77 = vmatprep.subr.mxu0 0.0
    %78 = vmatpush1.msra.mxu0 0.0
    %79 = vmatprep.subr.mxu0 0.0
    %80 = vmatpush1.msra.mxu0 0.0
    %81 = vmatprep.subr.mxu0 0.0
    %82 = vmatpush1.msra.mxu0 0.0
    %83 = vmatprep.subr.mxu0 0.0
    %84 = vmatpush1.msra.mxu0 0.0
    %85 = vmatprep.subr.mxu0 0.0
    %86 = vmatpush1.msra.mxu0 0.0
    %87 = vmatprep.subr.mxu0 0.0
    %88 = vmatpush1.msra.mxu0 0.0
    %89 = vmatprep.subr.mxu0 0.0
    %90 = vmatpush1.msra.mxu0 0.0
    %91 = vmatprep.subr.mxu0 0.0
    %92 = vmatpush1.msra.mxu0 0.0
    %93 = vmatprep.subr.mxu0 0.0
    %94 = vmatpush1.msra.mxu0 0.0
    %95 = vmatprep.subr.mxu0 0.0
    %96 = vmatpush1.msra.mxu0 0.0
    %97 = vmatprep.subr.mxu0 0.0
    %98 = vmatpush1.msra.mxu0 0.0
    %99 = vmatprep.mubr.f32.mxu0 0.0
    %100 = vmatmul.mubr.f32.gmra.mrb[0].mxu0 %v33
    %v101 = vpop.f32.mrb[0].mxu0
    %v102 = vadd.f32 %v29, %v101
    %v103 = vpop.f32.mrb[0].mxu0
    %104 = vdwg.mxu0
    %v105 = vmax.f32 %v102, 0.0
    %v106 = vld [vmem:[%s3] sm:$0xff]
    %v107 = vld [vmem:[%s3 + $0x8] sm:$0xff]
    %v108 = vld [vmem:[%s3 + $0x10] sm:$0xff]
    %v109 = vld [vmem:[%s3 + $0x18] sm:$0xff]
    %v110 = vld [vmem:[%s3 + $0x20] sm:$0xff]
    %v111 = vld [vmem:[%s3 + $0x28] sm:$0xff]
    %v112 = vld [vmem:[%s3 + $0x30] sm:$0xff]
    %v113 = vld [vmem:[%s3 + $0x38] sm:$0xff]
    %v114 = vld [vmem:[%s3 + $0x40] sm:$0xff]
    %v115 = vld [vmem:[%s3 + $0x48] sm:$0xff]
    %v116 = vld [vmem:[%s3 + $0x50] sm:$0xff]
    %v117 = vld [vmem:[%s3 + $0x58] sm:$0xff]
    %v118 = vld [vmem:[%s3 + $0x60] sm:$0xff]
    %v119 = vld [vmem:[%s3 + $0x68] sm:$0xff]
    %v120 = vld [vmem:[%s3 + $0x70] sm:$0xff]
    %v121 = vld [vmem:[%s3 + $0x78] sm:$0xff]
    %v122 = vld [vmem:[%s4] sm:$0x1]
    %v124 = vlaneseq
    %v125 = vshrl.u32 %v124, 7
    %v126 = vsub.s32 0, %v125
    %v127 = vrot.slane %v122, %v126
    %129 = vmatprep.subr.mxu0 0.0
    %130 = vmatpush1.msra.mxu0 %v106
    %131 = vmatprep.subr.mxu0 0.0
    %132 = vmatpush1.msra.mxu0 %v107
    %133 = vmatprep.subr.mxu0 0.0
    %134 = vmatpush1.msra.mxu0 %v108
    %135 = vmatprep.subr.mxu0 0.0
    %136 = vmatpush1.msra.mxu0 %v109
    %137 = vmatprep.subr.mxu0 0.0
    %138 = vmatpush1.msra.mxu0 %v110
    %139 = vmatprep.subr.mxu0 0.0
    %140 = vmatpush1.msra.mxu0 %v111
    %141 = vmatprep.subr.mxu0 0.0
    %142 = vmatpush1.msra.mxu0 %v112
    %143 = vmatprep.subr.mxu0 0.0
    %144 = vmatpush1.msra.mxu0 %v113
    %145 = vmatprep.subr.mxu0 0.0
    %146 = vmatpush1.msra.mxu0 %v114
    %147 = vmatprep.subr.mxu0 0.0
    %148 = vmatpush1.msra.mxu0 %v115
    %149 = vmatprep.subr.mxu0 0.0
    %150 = vmatpush1.msra.mxu0 %v116
    %151 = vmatprep.subr.mxu0 0.0
    %152 = vmatpush1.msra.mxu0 %v117
    %153 = vmatprep.subr.mxu0 0.0
    %154 = vmatpush1.msra.mxu0 %v118
    %155 = vmatprep.subr.mxu0 0.0
    %156 = vmatpush1.msra.mxu0 %v119
    %157 = vmatprep.subr.mxu0 0.0
    %158 = vmatpush1.msra.mxu0 %v120
    %159 = vmatprep.subr.mxu0 0.0
    %160 = vmatpush1.msra.mxu0 %v121
    %161 = vmatprep.subr.mxu0 0.0
    %162 = vmatpush1.msra.mxu0 0.0
    %163 = vmatprep.subr.mxu0 0.0
    %164 = vmatpush1.msra.mxu0 0.0
    %165 = vmatprep.subr.mxu0 0.0
    %166 = vmatpush1.msra.mxu0 0.0
    %167 = vmatprep.subr.mxu0 0.0
    %168 = vmatpush1.msra.mxu0 0.0
    %169 = vmatprep.subr.mxu0 0.0
    %170 = vmatpush1.msra.mxu0 0.0
    %171 = vmatprep.subr.mxu0 0.0
    %172 = vmatpush1.msra.mxu0 0.0
    %173 = vmatprep.subr.mxu0 0.0
    %174 = vmatpush1.msra.mxu0 0.0
    %175 = vmatprep.subr.mxu0 0.0
    %176 = vmatpush1.msra.mxu0 0.0
    %177 = vmatprep.subr.mxu0 0.0
    %178 = vmatpush1.msra.mxu0 0.0
    %179 = vmatprep.subr.mxu0 0.0
    %180 = vmatpush1.msra.mxu0 0.0
    %181 = vmatprep.subr.mxu0 0.0
    %182 = vmatpush1.msra.mxu0 0.0
    %183 = vmatprep.subr.mxu0 0.0
    %184 = vmatpush1.msra.mxu0 0.0
    %185 = vmatprep.subr.mxu0 0.0
    %186 = vmatpush1.msra.mxu0 0.0
    %187 = vmatprep.subr.mxu0 0.0
    %188 = vmatpush1.msra.mxu0 0.0
    %189 = vmatprep.subr.mxu0 0.0
    %190 = vmatpush1.msra.mxu0 0.0
    %191 = vmatprep.subr.mxu0 0.0
    %192 = vmatpush1.msra.mxu0 0.0
    %193 = vmatprep.mubr.f32.mxu0 0.0
    %194 = vmatmul.mubr.f32.gmra.mrb[0].mxu0 %v105
    %v195 = vpop.f32.mrb[0].mxu0
    %v196 = vadd.f32 %v127, %v195
    %v197 = vpop.f32.mrb[0].mxu0
    %198 = vdwg.mxu0
    %vm199 = vcmask 64512
    %200 = vst.msk [vmem:[#allocation2] sm:$0xff] %vm199, %v196
    // Predicated region
    $region22: #{simple_behavior_net.1} parent=1 // pred_check
      _
    $region23: #{simple_behavior_net.1} parent=1 // pred_check_branch
      %202 = sbr.rel (0) target = $region25
    $region24: #{simple_behavior_net.1} parent=1 // pred_region
      %s204 = ssub.s32 128, 128
      %205 = vsyncadd [#allocation3], %s204
      %s207 = sshll.u32 [#allocation2], 4
      %s208 = int_to_ptr.vmem [resolvable:$true] %s207
      %210 = dma.vmem_to_hbm [thread:$0]  %s208, 128, %s5, [#allocation3]
    $region25: #{simple_behavior_net.1} parent=1 // pred_fallthru
      _
    // Predicated region
    $region26: #{simple_behavior_net.1} parent=1 // pred_check
      _
    $region27: #{simple_behavior_net.1} parent=1 // pred_check_branch
      %212 = sbr.rel (0) target = $region29
    $region28: #{simple_behavior_net.1} parent=1 // pred_region
      %213 = dma.done [#allocation3], 128
    $region29: #{simple_behavior_net.1} parent=1 // pred_fallthru
      _
    %214 = vsyncpa [#allocation3], 1

</llo_original>
